<compile_context>
chip_gen: v6e
topology: v6e:2x2x1
jax: 0.10.0
libtpu: 0.0.40
codegen_flags: <defaults>
</compile_context>

<pallas_src>
import jax
import jax.numpy as jnp
import numpy as np
from jax.experimental import pallas as pl
from jax.experimental.pallas import tpu as pltpu


# ---------------------------------------------------------------------------
# Fused kernel
# ---------------------------------------------------------------------------
def resblock_kernel(x_ref, w1_ref, b1_ref, w2_ref, b2_ref, o_ref):
    # x_ref  : (Bt, R, L) f32   row-pair packed input, R = H/2, L = 2*W*C
    # w*_ref : (3, L, L)  bf16  (prev, self, next) row-pair band matrices
    # b*_ref : (1, L)     f32   folded BN bias
    # o_ref  : (Bt, R, L) f32   row-pair packed output
    Bt, R, L = o_ref.shape
    M = Bt * R

    x_f32 = x_ref[...].reshape(M, L)            # contiguous -> free view
    x_bf16 = x_f32.astype(jnp.bfloat16)

    # row-pair index inside each image; shared by both convs
    pair_idx = jax.lax.broadcasted_iota(jnp.int32, (Bt, R, L), 1).reshape(M, L)
    has_prev = pair_idx != 0            # upper neighbour row-pair exists
    has_next = pair_idx != (R - 1)      # lower neighbour row-pair exists

    def conv3x3(z_bf16, w_ref, b_ref):
        # 3x3 SAME conv + folded BN as 3 accumulated (M, L) @ (L, L) MXU dots.
        s_self = jnp.dot(z_bf16, w_ref[1], preferred_element_type=jnp.float32)
        s_prev = jnp.dot(z_bf16, w_ref[0], preferred_element_type=jnp.float32)
        s_next = jnp.dot(z_bf16, w_ref[2], preferred_element_type=jnp.float32)
        # s_prev[j] is pair j's contribution to pair j+1 (s_next[j] to j-1):
        # align with sublane rolls (XLU) and mask the image boundaries so no
        # contribution leaks across images / the batch wrap-around.
        prev = jnp.where(has_prev, pltpu.roll(s_prev, 1, axis=0), 0.0)
        nxt = jnp.where(has_next, pltpu.roll(s_next, M - 1, axis=0), 0.0)
        return s_self + prev + nxt + b_ref[...]

    # conv1 + folded BN1 + ReLU
    y1 = jnp.maximum(conv3x3(x_bf16, w1_ref, b1_ref), 0.0)
    # conv2 + folded BN2 + ReLU (y1 consumed directly, no scratch round-trip)
    y2 = jnp.maximum(conv3x3(y1.astype(jnp.bfloat16), w2_ref, b2_ref), 0.0)
    # residual add (f32) + final ReLU
    o_ref[...] = jnp.maximum(x_f32 + y2, 0.0).reshape(Bt, R, L)


# ---------------------------------------------------------------------------
# Weight folding: eval-mode BN + SAME W-padding -> row-pair band matrices
# ---------------------------------------------------------------------------
def _fold_bn_rowpair(w_oihw, gamma, beta, rmean, rvar, eps, W, C):
    """Returns (3, 2*W*C, 2*W*C) bf16 band matrices (prev, self, next) and the
    folded bias row (1, 2*W*C) f32 for the row-pair packed layout."""
    scale = gamma / jnp.sqrt(rvar + eps)                           # (C,)
    w_hwio = jnp.transpose(w_oihw, (2, 3, 1, 0)) * scale           # (ky,kx,ci,co)
    bias = beta - rmean * scale                                    # (C,)

    WC = W * C
    iw = jnp.arange(W)[:, None]          # input column
    ow = jnp.arange(W)[None, :]          # output column
    kx = iw - ow + 1                     # kernel tap, valid when 0..2
    valid = ((kx >= 0) & (kx <= 2)).astype(jnp.float32)
    band = w_hwio[:, jnp.clip(kx, 0, 2)] * valid[None, :, :, None, None]
    # (ky, iw, ow, ci, co) -> (ky, iw, ci, ow, co) -> (3, W*C, W*C)
    band = jnp.transpose(band, (0, 1, 3, 2, 4)).reshape(3, WC, WC)

    Z = jnp.zeros((WC, WC), jnp.float32)
    # in pair r-1 (rows 2r-2, 2r-1) -> out pair r: row 2r-1 hits row 2r via ky=0
    w_prev = jnp.block([[Z, Z], [band[0], Z]])
    # in pair r -> out pair r (all within-pair taps)
    w_self = jnp.block([[band[1], band[0]], [band[2], band[1]]])
    # in pair r+1 (rows 2r+2, 2r+3) -> out pair r: row 2r+2 hits row 2r+1 via ky=2
    w_next = jnp.block([[Z, band[2]], [Z, Z]])

    w_stack = jnp.stack([w_prev, w_self, w_next]).astype(jnp.bfloat16)
    bias_row = jnp.tile(bias, 2 * W).reshape(1, 2 * WC).astype(jnp.float32)
    return w_stack, bias_row


# ---------------------------------------------------------------------------
# Wrapper
# ---------------------------------------------------------------------------
def resblock_pallas(x_nchw, p, eps=1e-5):
    B, C, H, W = x_nchw.shape
    assert H % 2 == 0, "row-pair packing assumes even H"  # TODO(synk): pad odd H
    R = H // 2
    WC = W * C
    L = 2 * WC

    # The only wrapper HBM relayout: NCHW -> NHWC; the row-pair lane packing
    # (B, H, W*C) -> (B, H/2, 2*W*C) is a free reshape of contiguous data.
    x = jnp.transpose(x_nchw, (0, 2, 3, 1)).astype(jnp.float32).reshape(B, R, L)

    w1s, b1r = _fold_bn_rowpair(p['w1'], p['g1'], p['b1'], p['rm1'], p['rv1'], eps, W, C)
    w2s, b2r = _fold_bn_rowpair(p['w2'], p['g2'], p['b2'], p['rm2'], p['rv2'], eps, W, C)

    # Batch block: target M = Bt*R >= 256 matmul rows; prefer >= 2 grid steps
    # (megacore) when each step still gets M >= 128; pad the batch up to a
    # multiple of Bt instead of degrading Bt.
    Bt = min(B, max(1, 256 // R))
    if B <= Bt and B >= 2 * max(1, 128 // R):
        Bt = pl.cdiv(B, 2)
    Bpad = pl.cdiv(B, Bt) * Bt
    if Bpad != B:
        x = jnp.pad(x, ((0, Bpad - B), (0, 0), (0, 0)))

    out = pl.pallas_call(
        resblock_kernel,
        out_shape=jax.ShapeDtypeStruct((Bpad, R, L), jnp.float32),
        grid_spec=pltpu.PrefetchScalarGridSpec(
            num_scalar_prefetch=0,
            grid=(Bpad // Bt,),
            in_specs=[
                pl.BlockSpec((Bt, R, L), lambda i: (i, 0, 0)),   # packed activations
                pl.BlockSpec((3, L, L), lambda i: (0, 0, 0)),    # conv1 band (resident)
                pl.BlockSpec((1, L), lambda i: (0, 0)),          # folded bias1
                pl.BlockSpec((3, L, L), lambda i: (0, 0, 0)),    # conv2 band (resident)
                pl.BlockSpec((1, L), lambda i: (0, 0)),          # folded bias2
            ],
            out_specs=pl.BlockSpec((Bt, R, L), lambda i: (i, 0, 0)),
        ),
        compiler_params=pltpu.CompilerParams(
            dimension_semantics=("parallel",),
        ),
    )(x, w1s, b1r, w2s, b2r)

    # drop batch padding, free reshape back to NHWC, one transpose to NCHW
    y = out[:B].reshape(B, H, W, C)
    return jnp.transpose(y, (0, 3, 1, 2))


# ---------------------------------------------------------------------------
# Pure-JAX reference (eval-mode BN), for verification
# ---------------------------------------------------------------------------
def resblock_ref(x_nchw, p, eps=1e-5):
    def conv(z, w):
        return jax.lax.conv_general_dilated(
            z, w, (1, 1), 'SAME',
            dimension_numbers=('NCHW', 'OIHW', 'NCHW'))

    def bn(z, g, b, rm, rv):
        return ((z - rm[None, :, None, None])
                / jnp.sqrt(rv[None, :, None, None] + eps)
                * g[None, :, None, None] + b[None, :, None, None])

    y = jax.nn.relu(bn(conv(x_nchw, p['w1']), p['g1'], p['b1'], p['rm1'], p['rv1']))
    y = jax.nn.relu(bn(conv(y, p['w2']), p['g2'], p['b2'], p['rm2'], p['rv2']))
    return jax.nn.relu(x_nchw + y)


# ---------------------------------------------------------------------------
if __name__ == "__main__":
    key = jax.random.PRNGKey(0)
    B, C, H, W = 2, 4, 16, 16
    ks = jax.random.split(key, 11)

    x = jax.random.normal(ks[0], (B, C, H, W), jnp.float32)
    params = {
        'w1': jax.random.normal(ks[1], (C, C, 3, 3), jnp.float32) * 0.2,
        'g1': jax.random.uniform(ks[2], (C,), jnp.float32, 0.5, 1.5),
        'b1': jax.random.normal(ks[3], (C,), jnp.float32) * 0.1,
        'rm1': jax.random.normal(ks[4], (C,), jnp.float32) * 0.1,
        'rv1': jax.random.uniform(ks[5], (C,), jnp.float32, 0.5, 1.5),
        'w2': jax.random.normal(ks[6], (C, C, 3, 3), jnp.float32) * 0.2,
        'g2': jax.random.uniform(ks[7], (C,), jnp.float32, 0.5, 1.5),
        'b2': jax.random.normal(ks[8], (C,), jnp.float32) * 0.1,
        'rm2': jax.random.normal(ks[9], (C,), jnp.float32) * 0.1,
        'rv2': jax.random.uniform(ks[10], (C,), jnp.float32, 0.5, 1.5),
    }

    out = resblock_pallas(x, params)
    jax.block_until_ready(out)

    ref = resblock_ref(x, params)
    # bf16 MXU operands (f32 accumulation): tolerance relaxed from 1e-4.
    np.testing.assert_allclose(np.asarray(out), np.asarray(ref),
                               rtol=5e-2, atol=5e-2)
    print("KERNEL_OK")
</pallas_src>

<mosaic_0001>
module attributes {stable_mosaic.version = 11 : i64} {
  func.func @resblock_kernel(%arg0: i32, %arg1: memref<2x8x128xf32, #tpu.memory_space<vmem>>, %arg2: memref<3x128x128xbf16, #tpu.memory_space<vmem>>, %arg3: memref<1x128xf32, #tpu.memory_space<vmem>>, %arg4: memref<3x128x128xbf16, #tpu.memory_space<vmem>>, %arg5: memref<1x128xf32, #tpu.memory_space<vmem>>, %arg6: memref<2x8x128xf32, #tpu.memory_space<vmem>>) attributes {dimension_semantics = [#tpu.dimension_semantics<parallel>], iteration_bounds = array<i64: 1>, scalar_prefetch = 0 : i64, scratch_operands = 0 : i64, tpu.core_type = #tpu.core_type<tc>, window_params = [{transform_indices = @transform_0, window_bounds = array<i64: 2, 8, 128>}, {pipeline_mode = #tpu.pipeline_mode<synchronous>, transform_indices = @transform_1, window_bounds = array<i64: 3, 128, 128>}, {pipeline_mode = #tpu.pipeline_mode<synchronous>, transform_indices = @transform_2, window_bounds = array<i64: 1, 128>}, {pipeline_mode = #tpu.pipeline_mode<synchronous>, transform_indices = @transform_3, window_bounds = array<i64: 3, 128, 128>}, {pipeline_mode = #tpu.pipeline_mode<synchronous>, transform_indices = @transform_4, window_bounds = array<i64: 1, 128>}, {transform_indices = @transform_5, window_bounds = array<i64: 2, 8, 128>}]} {
    %c0 = arith.constant 0 : index
    %c0_0 = arith.constant 0 : index
    %c0_1 = arith.constant 0 : index
    %0 = vector.load %arg1[%c0, %c0_0, %c0_1] : memref<2x8x128xf32, #tpu.memory_space<vmem>>, vector<2x8x128xf32>
    %1 = vector.shape_cast %0 : vector<2x8x128xf32> to vector<16x128xf32>
    %2 = arith.truncf %1 : vector<16x128xf32> to vector<16x128xbf16>
    %3 = tpu.iota {dimensions = array<i32: 1>} : vector<2x8x128xi32>
    %4 = vector.shape_cast %3 : vector<2x8x128xi32> to vector<16x128xi32>
    %c0_i32 = arith.constant 0 : i32
    %5 = vector.broadcast %c0_i32 : i32 to vector<16x128xi32>
    %6 = arith.cmpi ne, %4, %5 : vector<16x128xi32>
    %c7_i32 = arith.constant 7 : i32
    %7 = vector.broadcast %c7_i32 : i32 to vector<16x128xi32>
    %8 = arith.cmpi ne, %4, %7 : vector<16x128xi32>
    %c1 = arith.constant 1 : index
    %c0_2 = arith.constant 0 : index
    %c0_3 = arith.constant 0 : index
    %9 = vector.load %arg2[%c1, %c0_2, %c0_3] : memref<3x128x128xbf16, #tpu.memory_space<vmem>>, vector<1x128x128xbf16>
    %10 = vector.shape_cast %9 : vector<1x128x128xbf16> to vector<128x128xbf16>
    %cst = arith.constant dense<0.000000e+00> : vector<16x128xf32>
    %11 = tpu.matmul %2, %10, %cst {dimension_numbers = #tpu.dot_dimension_numbers<[1], [0], [0], [1], [0, 0, 1, 1], [], []>} : vector<16x128xbf16>, vector<128x128xbf16>, vector<16x128xf32> -> vector<16x128xf32>
    %c0_4 = arith.constant 0 : index
    %c0_5 = arith.constant 0 : index
    %c0_6 = arith.constant 0 : index
    %12 = vector.load %arg2[%c0_4, %c0_5, %c0_6] : memref<3x128x128xbf16, #tpu.memory_space<vmem>>, vector<1x128x128xbf16>
    %13 = vector.shape_cast %12 : vector<1x128x128xbf16> to vector<128x128xbf16>
    %cst_7 = arith.constant dense<0.000000e+00> : vector<16x128xf32>
    %14 = tpu.matmul %2, %13, %cst_7 {dimension_numbers = #tpu.dot_dimension_numbers<[1], [0], [0], [1], [0, 0, 1, 1], [], []>} : vector<16x128xbf16>, vector<128x128xbf16>, vector<16x128xf32> -> vector<16x128xf32>
    %c2 = arith.constant 2 : index
    %c0_8 = arith.constant 0 : index
    %c0_9 = arith.constant 0 : index
    %15 = vector.load %arg2[%c2, %c0_8, %c0_9] : memref<3x128x128xbf16, #tpu.memory_space<vmem>>, vector<1x128x128xbf16>
    %16 = vector.shape_cast %15 : vector<1x128x128xbf16> to vector<128x128xbf16>
    %cst_10 = arith.constant dense<0.000000e+00> : vector<16x128xf32>
    %17 = tpu.matmul %2, %16, %cst_10 {dimension_numbers = #tpu.dot_dimension_numbers<[1], [0], [0], [1], [0, 0, 1, 1], [], []>} : vector<16x128xbf16>, vector<128x128xbf16>, vector<16x128xf32> -> vector<16x128xf32>
    %c1_i32 = arith.constant 1 : i32
    %18 = tpu.dynamic_rotate %14 by %c1_i32 dim 0 : vector<16x128xf32>, i32 -> vector<16x128xf32>
    %cst_11 = arith.constant 0.000000e+00 : f32
    %19 = vector.broadcast %cst_11 : f32 to vector<16x128xf32>
    %20 = arith.select %6, %18, %19 : vector<16x128xi1>, vector<16x128xf32>
    %c15_i32 = arith.constant 15 : i32
    %21 = tpu.dynamic_rotate %17 by %c15_i32 dim 0 : vector<16x128xf32>, i32 -> vector<16x128xf32>
    %cst_12 = arith.constant 0.000000e+00 : f32
    %22 = vector.broadcast %cst_12 : f32 to vector<16x128xf32>
    %23 = arith.select %8, %21, %22 : vector<16x128xi1>, vector<16x128xf32>
    %24 = arith.addf %11, %20 : vector<16x128xf32>
    %25 = arith.addf %24, %23 : vector<16x128xf32>
    %c0_13 = arith.constant 0 : index
    %c0_14 = arith.constant 0 : index
    %26 = vector.load %arg3[%c0_13, %c0_14] : memref<1x128xf32, #tpu.memory_space<vmem>>, vector<1x128xf32>
    %27 = vector.broadcast %26 : vector<1x128xf32> to vector<16x128xf32>
    %28 = arith.addf %25, %27 : vector<16x128xf32>
    %cst_15 = arith.constant 0.000000e+00 : f32
    %29 = vector.broadcast %cst_15 : f32 to vector<16x128xf32>
    %30 = arith.maximumf %28, %29 : vector<16x128xf32>
    %31 = arith.truncf %30 : vector<16x128xf32> to vector<16x128xbf16>
    %c1_16 = arith.constant 1 : index
    %c0_17 = arith.constant 0 : index
    %c0_18 = arith.constant 0 : index
    %32 = vector.load %arg4[%c1_16, %c0_17, %c0_18] : memref<3x128x128xbf16, #tpu.memory_space<vmem>>, vector<1x128x128xbf16>
    %33 = vector.shape_cast %32 : vector<1x128x128xbf16> to vector<128x128xbf16>
    %cst_19 = arith.constant dense<0.000000e+00> : vector<16x128xf32>
    %34 = tpu.matmul %31, %33, %cst_19 {dimension_numbers = #tpu.dot_dimension_numbers<[1], [0], [0], [1], [0, 0, 1, 1], [], []>} : vector<16x128xbf16>, vector<128x128xbf16>, vector<16x128xf32> -> vector<16x128xf32>
    %c0_20 = arith.constant 0 : index
    %c0_21 = arith.constant 0 : index
    %c0_22 = arith.constant 0 : index
    %35 = vector.load %arg4[%c0_20, %c0_21, %c0_22] : memref<3x128x128xbf16, #tpu.memory_space<vmem>>, vector<1x128x128xbf16>
    %36 = vector.shape_cast %35 : vector<1x128x128xbf16> to vector<128x128xbf16>
    %cst_23 = arith.constant dense<0.000000e+00> : vector<16x128xf32>
    %37 = tpu.matmul %31, %36, %cst_23 {dimension_numbers = #tpu.dot_dimension_numbers<[1], [0], [0], [1], [0, 0, 1, 1], [], []>} : vector<16x128xbf16>, vector<128x128xbf16>, vector<16x128xf32> -> vector<16x128xf32>
    %c2_24 = arith.constant 2 : index
    %c0_25 = arith.constant 0 : index
    %c0_26 = arith.constant 0 : index
    %38 = vector.load %arg4[%c2_24, %c0_25, %c0_26] : memref<3x128x128xbf16, #tpu.memory_space<vmem>>, vector<1x128x128xbf16>
    %39 = vector.shape_cast %38 : vector<1x128x128xbf16> to vector<128x128xbf16>
    %cst_27 = arith.constant dense<0.000000e+00> : vector<16x128xf32>
    %40 = tpu.matmul %31, %39, %cst_27 {dimension_numbers = #tpu.dot_dimension_numbers<[1], [0], [0], [1], [0, 0, 1, 1], [], []>} : vector<16x128xbf16>, vector<128x128xbf16>, vector<16x128xf32> -> vector<16x128xf32>
    %c1_i32_28 = arith.constant 1 : i32
    %41 = tpu.dynamic_rotate %37 by %c1_i32_28 dim 0 : vector<16x128xf32>, i32 -> vector<16x128xf32>
    %cst_29 = arith.constant 0.000000e+00 : f32
    %42 = vector.broadcast %cst_29 : f32 to vector<16x128xf32>
    %43 = arith.select %6, %41, %42 : vector<16x128xi1>, vector<16x128xf32>
    %c15_i32_30 = arith.constant 15 : i32
    %44 = tpu.dynamic_rotate %40 by %c15_i32_30 dim 0 : vector<16x128xf32>, i32 -> vector<16x128xf32>
    %cst_31 = arith.constant 0.000000e+00 : f32
    %45 = vector.broadcast %cst_31 : f32 to vector<16x128xf32>
    %46 = arith.select %8, %44, %45 : vector<16x128xi1>, vector<16x128xf32>
    %47 = arith.addf %34, %43 : vector<16x128xf32>
    %48 = arith.addf %47, %46 : vector<16x128xf32>
    %c0_32 = arith.constant 0 : index
    %c0_33 = arith.constant 0 : index
    %49 = vector.load %arg5[%c0_32, %c0_33] : memref<1x128xf32, #tpu.memory_space<vmem>>, vector<1x128xf32>
    %50 = vector.broadcast %49 : vector<1x128xf32> to vector<16x128xf32>
    %51 = arith.addf %48, %50 : vector<16x128xf32>
    %cst_34 = arith.constant 0.000000e+00 : f32
    %52 = vector.broadcast %cst_34 : f32 to vector<16x128xf32>
    %53 = arith.maximumf %51, %52 : vector<16x128xf32>
    %54 = arith.addf %1, %53 : vector<16x128xf32>
    %cst_35 = arith.constant 0.000000e+00 : f32
    %55 = vector.broadcast %cst_35 : f32 to vector<16x128xf32>
    %56 = arith.maximumf %54, %55 : vector<16x128xf32>
    %57 = vector.shape_cast %56 : vector<16x128xf32> to vector<2x8x128xf32>
    %c0_36 = arith.constant 0 : index
    %c0_37 = arith.constant 0 : index
    %c0_38 = arith.constant 0 : index
    %58 = vector.load %arg6[%c0_36, %c0_37, %c0_38] : memref<2x8x128xf32, #tpu.memory_space<vmem>>, vector<2x8x128xf32>
    tpu.vector_store %arg6[%c0_36, %c0_37, %c0_38], %57 {strides = array<i32>} : memref<2x8x128xf32, #tpu.memory_space<vmem>>, vector<2x8x128xf32>,
    return
  }
  func.func @transform_0(%arg0: i32) -> (i32, i32, i32) {
    %c0_i32 = arith.constant 0 : i32
    %c0_i32_0 = arith.constant 0 : i32
    %c0_i32_1 = arith.constant 0 : i32
    return %arg0, %c0_i32, %c0_i32_0 : i32, i32, i32
  }
  func.func @transform_1(%arg0: i32) -> (i32, i32, i32) {
    %c0_i32 = arith.constant 0 : i32
    %c0_i32_0 = arith.constant 0 : i32
    %c0_i32_1 = arith.constant 0 : i32
    %c0_i32_2 = arith.constant 0 : i32
    return %c0_i32, %c0_i32_0, %c0_i32_1 : i32, i32, i32
  }
  func.func @transform_2(%arg0: i32) -> (i32, i32) {
    %c0_i32 = arith.constant 0 : i32
    %c0_i32_0 = arith.constant 0 : i32
    %c0_i32_1 = arith.constant 0 : i32
    return %c0_i32, %c0_i32_0 : i32, i32
  }
  func.func @transform_3(%arg0: i32) -> (i32, i32, i32) {
    %c0_i32 = arith.constant 0 : i32
    %c0_i32_0 = arith.constant 0 : i32
    %c0_i32_1 = arith.constant 0 : i32
    %c0_i32_2 = arith.constant 0 : i32
    return %c0_i32, %c0_i32_0, %c0_i32_1 : i32, i32, i32
  }
  func.func @transform_4(%arg0: i32) -> (i32, i32) {
    %c0_i32 = arith.constant 0 : i32
    %c0_i32_0 = arith.constant 0 : i32
    %c0_i32_1 = arith.constant 0 : i32
    return %c0_i32, %c0_i32_0 : i32, i32
  }
  func.func @transform_5(%arg0: i32) -> (i32, i32, i32) {
    %c0_i32 = arith.constant 0 : i32
    %c0_i32_0 = arith.constant 0 : i32
    %c0_i32_1 = arith.constant 0 : i32
    return %arg0, %c0_i32, %c0_i32_0 : i32, i32, i32
  }
}

</mosaic_0001>

<llo_original>
// kernel: tpu_custom_call.1
$region0: #{tpu_custom_call.1}
  #allocation0 [shape = 'u32[]', space=smem, size = 0x4, offset = 0x4, fixed_abs, tag = 'smem constant byte address 0x4 - core index']
  #allocation1 [shape = 'u32[144,128]{1,0:T(1,128)}', space=vmem, size = 0x12000, scoped, tag = 'internal scratch']
  %s0 = inlined_call_operand.hbm [shape: f32[2,8,128], index: 0, kind: input, shape index: {}]
  %s1 = inlined_call_operand.hbm [shape: bf16[3,128,128], index: 1, kind: input, shape index: {}]
  %s2 = inlined_call_operand.vmem [shape: f32[1,128], index: 2, kind: input, shape index: {}]
  %s3 = inlined_call_operand.hbm [shape: bf16[3,128,128], index: 3, kind: input, shape index: {}]
  %s4 = inlined_call_operand.vmem [shape: f32[1,128], index: 4, kind: input, shape index: {}]
  %s5 = inlined_call_operand.hbm [shape: f32[2,8,128], index: 5, kind: output, shape index: {}]
  %s6 = sld [smem:[#allocation0]]
  $region42: #{tpu_custom_call.1} parent=0
    _
  %s8 = ssub.s32 1, %s6
  %s9 = scalar_select 0, %s8, %s6
  $region1: #{tpu_custom_call.1} parent=0
    #allocation2 [shape = 'u8[8192]{0}', space=vmem, size = 0x2000, scoped, tag = 'input window, operand 0, single buffered']
    #allocation3 [shape = 's32[1]{0}', space=sflag, size = 0x4, scoped, tag = 'scoped memory for tpu_custom_call.1']
    #allocation4 [shape = 's32[1]{0}', space=sflag, size = 0x4, scoped, tag = 'scoped memory for tpu_custom_call.1']
    #allocation5 [shape = 'u8[98304]{0}', space=vmem, size = 0x18000, scoped, tag = 'input window, operand 1, single buffered']
    #allocation6 [shape = 's32[1]{0}', space=sflag, size = 0x4, scoped, tag = 'scoped memory for tpu_custom_call.1']
    #allocation7 [shape = 'u8[98304]{0}', space=vmem, size = 0x18000, scoped, tag = 'input window, operand 3, single buffered']
    #allocation8 [shape = 'u8[8192]{0}', space=vmem, size = 0x2000, scoped, tag = 'output window, operand 0, single buffered']
    %10 = vsyncpa [#allocation3], 0
    %11 = vsyncpa [#allocation6], 0
    %12 = vsyncpa [#allocation4], 0
    // Predicated region
    $region2: #{tpu_custom_call.1} parent=1 // pred_check
      _
    $region3: #{tpu_custom_call.1} parent=1 // pred_check_branch
      %14 = sbr.rel (0) target = $region5
    $region4: #{tpu_custom_call.1} parent=1 // pred_region
      %s16 = ssub.s32 256, 256
      %17 = vsyncadd [#allocation3], %s16
      %s18 = sshll.u32 [#allocation2], 4
      %s19 = int_to_ptr.vmem [resolvable:$true] %s18
      %24 = dma.hbm_to_vmem [thread:$0]  %s0, 256, %s19, [#allocation3], 128, 128, 8
    $region5: #{tpu_custom_call.1} parent=1 // pred_fallthru
      _
    // Predicated region
    $region6: #{tpu_custom_call.1} parent=1 // pred_check
      _
    $region7: #{tpu_custom_call.1} parent=1 // pred_check_branch
      %26 = sbr.rel (0) target = $region9
    $region8: #{tpu_custom_call.1} parent=1 // pred_region
      %s28 = ssub.s32 3072, 3072
      %29 = vsyncadd [#allocation6], %s28
      %s30 = sshll.u32 [#allocation5], 4
      %s31 = int_to_ptr.vmem [resolvable:$true] %s30
      %36 = dma.hbm_to_vmem [thread:$0]  %s1, 3072, %s31, [#allocation6], 64, 64, 4
    $region9: #{tpu_custom_call.1} parent=1 // pred_fallthru
      _
    // Predicated region
    $region10: #{tpu_custom_call.1} parent=1 // pred_check
      _
    $region11: #{tpu_custom_call.1} parent=1 // pred_check_branch
      %38 = sbr.rel (0) target = $region13
    $region12: #{tpu_custom_call.1} parent=1 // pred_region
      _
    $region13: #{tpu_custom_call.1} parent=1 // pred_fallthru
      _
    // Predicated region
    $region14: #{tpu_custom_call.1} parent=1 // pred_check
      _
    $region15: #{tpu_custom_call.1} parent=1 // pred_check_branch
      %40 = sbr.rel (0) target = $region17
    $region16: #{tpu_custom_call.1} parent=1 // pred_region
      %s42 = ssub.s32 3072, 3072
      %43 = vsyncadd [#allocation6], %s42
      %s44 = sshll.u32 [#allocation7], 4
      %s45 = int_to_ptr.vmem [resolvable:$true] %s44
      %50 = dma.hbm_to_vmem [thread:$0]  %s3, 3072, %s45, [#allocation6], 64, 64, 4
    $region17: #{tpu_custom_call.1} parent=1 // pred_fallthru
      _
    // Predicated region
    $region18: #{tpu_custom_call.1} parent=1 // pred_check
      _
    $region19: #{tpu_custom_call.1} parent=1 // pred_check_branch
      %52 = sbr.rel (0) target = $region21
    $region20: #{tpu_custom_call.1} parent=1 // pred_region
      _
    $region21: #{tpu_custom_call.1} parent=1 // pred_fallthru
      _
    // Predicated region
    $region22: #{tpu_custom_call.1} parent=1 // pred_check
      _
    $region23: #{tpu_custom_call.1} parent=1 // pred_check_branch
      %54 = sbr.rel (0) target = $region25
    $region24: #{tpu_custom_call.1} parent=1 // pred_region
      %55 = dma.done [#allocation3], 256
    $region25: #{tpu_custom_call.1} parent=1 // pred_fallthru
      _
    // Predicated region
    $region26: #{tpu_custom_call.1} parent=1 // pred_check
      _
    $region27: #{tpu_custom_call.1} parent=1 // pred_check_branch
      %57 = sbr.rel (0) target = $region29
    $region28: #{tpu_custom_call.1} parent=1 // pred_region
      %58 = dma.done [#allocation6], 3072
    $region29: #{tpu_custom_call.1} parent=1 // pred_fallthru
      _
    // Predicated region
    $region30: #{tpu_custom_call.1} parent=1 // pred_check
      _
    $region31: #{tpu_custom_call.1} parent=1 // pred_check_branch
      %60 = sbr.rel (0) target = $region33
    $region32: #{tpu_custom_call.1} parent=1 // pred_region
      %61 = dma.done [#allocation6], 3072
    $region33: #{tpu_custom_call.1} parent=1 // pred_fallthru
      _
    %v63 = vld [vmem:[#allocation2] sm:$0xff]
    %v64 = vld [vmem:[#allocation2 + $0x8] sm:$0xff]
    %v65 = vpack.c.bf16 %v64, %v63
    %v66 = vlaneseq
    %v67 = vshrl.u32 %v66, 7
    %vm68 = vcmp.ne.s32.totalorder %v67, 0
    %vm69 = vcmp.ne.s32.totalorder %v67, 7
    %s70 = scalar_lea.vmem [#allocation5], 64
    %v71 = vld [vmem:[%s70] sm:$0xf]
    %v72 = vld [vmem:[%s70 + $0x4] sm:$0xf]
    %v73 = vld [vmem:[%s70 + $0x8] sm:$0xf]
    %v74 = vld [vmem:[%s70 + $0xc] sm:$0xf]
    %v75 = vld [vmem:[%s70 + $0x10] sm:$0xf]
    %v76 = vld [vmem:[%s70 + $0x14] sm:$0xf]
    %v77 = vld [vmem:[%s70 + $0x18] sm:$0xf]
    %v78 = vld [vmem:[%s70 + $0x1c] sm:$0xf]
    %v79 = vld [vmem:[%s70 + $0x20] sm:$0xf]
    %v80 = vld [vmem:[%s70 + $0x24] sm:$0xf]
    %v81 = vld [vmem:[%s70 + $0x28] sm:$0xf]
    %v82 = vld [vmem:[%s70 + $0x2c] sm:$0xf]
    %v83 = vld [vmem:[%s70 + $0x30] sm:$0xf]
    %v84 = vld [vmem:[%s70 + $0x34] sm:$0xf]
    %v85 = vld [vmem:[%s70 + $0x38] sm:$0xf]
    %v86 = vld [vmem:[%s70 + $0x3c] sm:$0xf]
    %v87 = vld [vmem:[#allocation5] sm:$0xf]
    %v88 = vld [vmem:[#allocation5 + $0x4] sm:$0xf]
    %v89 = vld [vmem:[#allocation5 + $0x8] sm:$0xf]
    %v90 = vld [vmem:[#allocation5 + $0xc] sm:$0xf]
    %v91 = vld [vmem:[#allocation5 + $0x10] sm:$0xf]
    %v92 = vld [vmem:[#allocation5 + $0x14] sm:$0xf]
    %v93 = vld [vmem:[#allocation5 + $0x18] sm:$0xf]
    %v94 = vld [vmem:[#allocation5 + $0x1c] sm:$0xf]
    %v95 = vld [vmem:[#allocation5 + $0x20] sm:$0xf]
    %v96 = vld [vmem:[#allocation5 + $0x24] sm:$0xf]
    %v97 = vld [vmem:[#allocation5 + $0x28] sm:$0xf]
    %v98 = vld [vmem:[#allocation5 + $0x2c] sm:$0xf]
    %v99 = vld [vmem:[#allocation5 + $0x30] sm:$0xf]
    %v100 = vld [vmem:[#allocation5 + $0x34] sm:$0xf]
    %v101 = vld [vmem:[#allocation5 + $0x38] sm:$0xf]
    %v102 = vld [vmem:[#allocation5 + $0x3c] sm:$0xf]
    %v119 = vunpack.c.l.b16 %v87
    %v120 = vunpack.c.l.b16 %v88
    %v121 = vunpack.c.l.b16 %v89
    %v122 = vunpack.c.l.b16 %v90
    %v123 = vunpack.c.l.b16 %v91
    %v124 = vunpack.c.l.b16 %v92
    %v125 = vunpack.c.l.b16 %v93
    %v126 = vunpack.c.l.b16 %v94
    %v127 = vunpack.c.l.b16 %v95
    %v128 = vunpack.c.l.b16 %v96
    %v129 = vunpack.c.l.b16 %v97
    %v130 = vunpack.c.l.b16 %v98
    %v131 = vunpack.c.l.b16 %v99
    %v132 = vunpack.c.l.b16 %v100
    %v133 = vunpack.c.l.b16 %v101
    %v134 = vunpack.c.l.b16 %v102
    %v135 = vpack.c.b16 %v120, %v119
    %v136 = vpack.c.b16 %v122, %v121
    %v137 = vpack.c.b16 %v124, %v123
    %v138 = vpack.c.b16 %v126, %v125
    %v139 = vpack.c.b16 %v128, %v127
    %v140 = vpack.c.b16 %v130, %v129
    %v141 = vpack.c.b16 %v132, %v131
    %v142 = vpack.c.b16 %v134, %v133
    %151 = vmatprep.subr.bf16.mxu0 0
    %152 = vmatpush1.bf16.msra.mxu0 %v142
    %153 = vmatprep.subr.bf16.mxu0 0
    %154 = vmatpush1.bf16.msra.mxu0 %v141
    %155 = vmatprep.subr.bf16.mxu0 0
    %156 = vmatpush1.bf16.msra.mxu0 %v140
    %157 = vmatprep.subr.bf16.mxu0 0
    %158 = vmatpush1.bf16.msra.mxu0 %v139
    %159 = vmatprep.subr.bf16.mxu0 0
    %160 = vmatpush1.bf16.msra.mxu0 %v138
    %161 = vmatprep.subr.bf16.mxu0 0
    %162 = vmatpush1.bf16.msra.mxu0 %v137
    %163 = vmatprep.subr.bf16.mxu0 0
    %164 = vmatpush1.bf16.msra.mxu0 %v136
    %165 = vmatprep.subr.bf16.mxu0 0
    %166 = vmatpush1.bf16.msra.mxu0 %v135
    %167 = vmatprep.subr.bf16.mxu0 0
    %168 = vmatpush2.bf16.msra.mxu0 0
    %169 = vmatprep.subr.bf16.mxu0 0
    %170 = vmatpush2.bf16.msra.mxu0 0
    %171 = vmatprep.subr.bf16.mxu0 0
    %172 = vmatpush2.bf16.msra.mxu0 0
    %173 = vmatprep.subr.bf16.mxu0 0
    %174 = vmatpush2.bf16.msra.mxu0 0
    %175 = vmatprep.subr.bf16.mxu0 0
    %176 = vmatpush2.bf16.msra.mxu0 0
    %177 = vmatprep.subr.bf16.mxu0 0
    %178 = vmatpush2.bf16.msra.mxu0 0
    %179 = vmatprep.subr.bf16.mxu0 0
    %180 = vmatpush2.bf16.msra.mxu0 0
    %181 = vmatprep.subr.bf16.mxu0 0
    %182 = vmatpush2.bf16.msra.mxu0 0
    %183 = vmatprep.mubr.bf16.mxu0 0
    %184 = vmatmul.mubr.bf16.gmra.mxu0 %v65
    %v185 = vpop.f32.mrf.mxu0
    %v186 = vadd.f32 0.0, %v185
    %v187 = vpop.f32.mrf.mxu0
    %v188 = vpop.f32.mrf.mxu0
    %v189 = vadd.f32 0.0, %v188
    %v190 = vpop.f32.mrf.mxu0
    %191 = vdwg.mxu0
    %s192 = scalar_lea.vmem [#allocation5], 128
    %v193 = vld [vmem:[%s192] sm:$0xf]
    %v194 = vld [vmem:[%s192 + $0x4] sm:$0xf]
    %v195 = vld [vmem:[%s192 + $0x8] sm:$0xf]
    %v196 = vld [vmem:[%s192 + $0xc] sm:$0xf]
    %v197 = vld [vmem:[%s192 + $0x10] sm:$0xf]
    %v198 = vld [vmem:[%s192 + $0x14] sm:$0xf]
    %v199 = vld [vmem:[%s192 + $0x18] sm:$0xf]
    %v200 = vld [vmem:[%s192 + $0x1c] sm:$0xf]
    %v201 = vld [vmem:[%s192 + $0x20] sm:$0xf]
    %v202 = vld [vmem:[%s192 + $0x24] sm:$0xf]
    %v203 = vld [vmem:[%s192 + $0x28] sm:$0xf]
    %v204 = vld [vmem:[%s192 + $0x2c] sm:$0xf]
    %v205 = vld [vmem:[%s192 + $0x30] sm:$0xf]
    %v206 = vld [vmem:[%s192 + $0x34] sm:$0xf]
    %v207 = vld [vmem:[%s192 + $0x38] sm:$0xf]
    %v208 = vld [vmem:[%s192 + $0x3c] sm:$0xf]
    %v225 = vunpack.c.l.b16 %v193
    %v226 = vunpack.c.l.b16 %v194
    %v227 = vunpack.c.l.b16 %v195
    %v228 = vunpack.c.l.b16 %v196
    %v229 = vunpack.c.l.b16 %v197
    %v230 = vunpack.c.l.b16 %v198
    %v231 = vunpack.c.l.b16 %v199
    %v232 = vunpack.c.l.b16 %v200
    %v233 = vunpack.c.l.b16 %v201
    %v234 = vunpack.c.l.b16 %v202
    %v235 = vunpack.c.l.b16 %v203
    %v236 = vunpack.c.l.b16 %v204
    %v237 = vunpack.c.l.b16 %v205
    %v238 = vunpack.c.l.b16 %v206
    %v239 = vunpack.c.l.b16 %v207
    %v240 = vunpack.c.l.b16 %v208
    %v241 = vpack.c.b16 %v226, %v225
    %v242 = vpack.c.b16 %v228, %v227
    %v243 = vpack.c.b16 %v230, %v229
    %v244 = vpack.c.b16 %v232, %v231
    %v245 = vpack.c.b16 %v234, %v233
    %v246 = vpack.c.b16 %v236, %v235
    %v247 = vpack.c.b16 %v238, %v237
    %v248 = vpack.c.b16 %v240, %v239
    %257 = vmatprep.subr.bf16.mxu0 0
    %258 = vmatpush1.bf16.msra.mxu0 %v248
    %259 = vmatprep.subr.bf16.mxu0 0
    %260 = vmatpush1.bf16.msra.mxu0 %v247
    %261 = vmatprep.subr.bf16.mxu0 0
    %262 = vmatpush1.bf16.msra.mxu0 %v246
    %263 = vmatprep.subr.bf16.mxu0 0
    %264 = vmatpush1.bf16.msra.mxu0 %v245
    %265 = vmatprep.subr.bf16.mxu0 0
    %266 = vmatpush1.bf16.msra.mxu0 %v244
    %267 = vmatprep.subr.bf16.mxu0 0
    %268 = vmatpush1.bf16.msra.mxu0 %v243
    %269 = vmatprep.subr.bf16.mxu0 0
    %270 = vmatpush1.bf16.msra.mxu0 %v242
    %271 = vmatprep.subr.bf16.mxu0 0
    %272 = vmatpush1.bf16.msra.mxu0 %v241
    %273 = vmatprep.subr.bf16.mxu0 0
    %274 = vmatpush2.bf16.msra.mxu0 0
    %275 = vmatprep.subr.bf16.mxu0 0
    %276 = vmatpush2.bf16.msra.mxu0 0
    %277 = vmatprep.subr.bf16.mxu0 0
    %278 = vmatpush2.bf16.msra.mxu0 0
    %279 = vmatprep.subr.bf16.mxu0 0
    %280 = vmatpush2.bf16.msra.mxu0 0
    %281 = vmatprep.subr.bf16.mxu0 0
    %282 = vmatpush2.bf16.msra.mxu0 0
    %283 = vmatprep.subr.bf16.mxu0 0
    %284 = vmatpush2.bf16.msra.mxu0 0
    %285 = vmatprep.subr.bf16.mxu0 0
    %286 = vmatpush2.bf16.msra.mxu0 0
    %287 = vmatprep.subr.bf16.mxu0 0
    %288 = vmatpush2.bf16.msra.mxu0 0
    %289 = vmatprep.mubr.bf16.mxu0 0
    %290 = vmatmul.mubr.bf16.gmra.mxu0 %v65
    %v291 = vpop.f32.mrf.mxu0
    %v292 = vadd.f32 0.0, %v291
    %v293 = vpop.f32.mrf.mxu0
    %v294 = vpop.f32.mrf.mxu0
    %v295 = vadd.f32 0.0, %v294
    %v296 = vpop.f32.mrf.mxu0
    %297 = vdwg.mxu0
    %v298 = vrot.slane %v186, 7
    %v299 = vrot.slane %v189, 7
    %vm300 = vcmp.lt.s32.totalorder %v67, 1
    %v301 = vsel %vm300, %v298, %v299
    %v302 = vsel %vm300, %v299, %v298
    %v303 = vsel %vm68, %v302, 0.0
    %v304 = vsel %vm68, %v301, 0.0
    %v305 = vrot.slane %v292, 1
    %v306 = vrot.slane %v295, 1
    %vm307 = vcmp.lt.s32.totalorder %v67, 7
    %v308 = vsel %vm307, %v305, %v306
    %v309 = vsel %vm307, %v306, %v305
    %v310 = vsel %vm69, %v308, 0.0
    %v311 = vsel %vm69, %v309, 0.0
    %v328 = vunpack.c.l.b16 %v71
    %v329 = vunpack.c.l.b16 %v72
    %v330 = vunpack.c.l.b16 %v73
    %v331 = vunpack.c.l.b16 %v74
    %v332 = vunpack.c.l.b16 %v75
    %v333 = vunpack.c.l.b16 %v76
    %v334 = vunpack.c.l.b16 %v77
    %v335 = vunpack.c.l.b16 %v78
    %v336 = vunpack.c.l.b16 %v79
    %v337 = vunpack.c.l.b16 %v80
    %v338 = vunpack.c.l.b16 %v81
    %v339 = vunpack.c.l.b16 %v82
    %v340 = vunpack.c.l.b16 %v83
    %v341 = vunpack.c.l.b16 %v84
    %v342 = vunpack.c.l.b16 %v85
    %v343 = vunpack.c.l.b16 %v86
    %v344 = vpack.c.b16 %v329, %v328
    %v345 = vpack.c.b16 %v331, %v330
    %v346 = vpack.c.b16 %v333, %v332
    %v347 = vpack.c.b16 %v335, %v334
    %v348 = vpack.c.b16 %v337, %v336
    %v349 = vpack.c.b16 %v339, %v338
    %v350 = vpack.c.b16 %v341, %v340
    %v351 = vpack.c.b16 %v343, %v342
    %360 = vmatprep.subr.bf16.mxu0 0
    %361 = vmatpush1.bf16.msra.mxu0 %v351
    %362 = vmatprep.subr.bf16.mxu0 0
    %363 = vmatpush1.bf16.msra.mxu0 %v350
    %364 = vmatprep.subr.bf16.mxu0 0
    %365 = vmatpush1.bf16.msra.mxu0 %v349
    %366 = vmatprep.subr.bf16.mxu0 0
    %367 = vmatpush1.bf16.msra.mxu0 %v348
    %368 = vmatprep.subr.bf16.mxu0 0
    %369 = vmatpush1.bf16.msra.mxu0 %v347
    %370 = vmatprep.subr.bf16.mxu0 0
    %371 = vmatpush1.bf16.msra.mxu0 %v346
    %372 = vmatprep.subr.bf16.mxu0 0
    %373 = vmatpush1.bf16.msra.mxu0 %v345
    %374 = vmatprep.subr.bf16.mxu0 0
    %375 = vmatpush1.bf16.msra.mxu0 %v344
    %376 = vmatprep.subr.bf16.mxu0 0
    %377 = vmatpush2.bf16.msra.mxu0 0
    %378 = vmatprep.subr.bf16.mxu0 0
    %379 = vmatpush2.bf16.msra.mxu0 0
    %380 = vmatprep.subr.bf16.mxu0 0
    %381 = vmatpush2.bf16.msra.mxu0 0
    %382 = vmatprep.subr.bf16.mxu0 0
    %383 = vmatpush2.bf16.msra.mxu0 0
    %384 = vmatprep.subr.bf16.mxu0 0
    %385 = vmatpush2.bf16.msra.mxu0 0
    %386 = vmatprep.subr.bf16.mxu0 0
    %387 = vmatpush2.bf16.msra.mxu0 0
    %388 = vmatprep.subr.bf16.mxu0 0
    %389 = vmatpush2.bf16.msra.mxu0 0
    %390 = vmatprep.subr.bf16.mxu0 0
    %391 = vmatpush2.bf16.msra.mxu0 0
    %392 = vmatprep.mubr.bf16.mxu0 0
    %393 = vmatmul.mubr.bf16.gmra.mxu0 %v65
    %v394 = vpop.f32.mrf.mxu0
    %v395 = vadd.f32 %v303, %v394
    %v396 = vpop.f32.mrf.mxu0
    %v397 = vpop.f32.mrf.mxu0
    %v398 = vadd.f32 %v304, %v397
    %v399 = vpop.f32.mrf.mxu0
    %400 = vdwg.mxu0
    %v401 = vadd.f32 %v395, %v310
    %v402 = vadd.f32 %v398, %v311
    %v403 = vld [vmem:[%s2] sm:$0x1]
    %v405 = vlaneseq
    %v406 = vshrl.u32 %v405, 7
    %v407 = vsub.s32 0, %v406
    %v408 = vrot.slane %v403, %v407
    %v410 = vadd.f32 %v401, %v408
    %v411 = vadd.f32 %v402, %v408
    %v412 = vmax.f32 %v410, 0.0
    %v413 = vmax.f32 %v411, 0.0
    %v414 = vpack.c.bf16 %v413, %v412
    %s415 = scalar_lea.vmem [#allocation7], 64
    %v416 = vld [vmem:[%s415] sm:$0xf]
    %v417 = vld [vmem:[%s415 + $0x4] sm:$0xf]
    %v418 = vld [vmem:[%s415 + $0x8] sm:$0xf]
    %v419 = vld [vmem:[%s415 + $0xc] sm:$0xf]
    %v420 = vld [vmem:[%s415 + $0x10] sm:$0xf]
    %v421 = vld [vmem:[%s415 + $0x14] sm:$0xf]
    %v422 = vld [vmem:[%s415 + $0x18] sm:$0xf]
    %v423 = vld [vmem:[%s415 + $0x1c] sm:$0xf]
    %v424 = vld [vmem:[%s415 + $0x20] sm:$0xf]
    %v425 = vld [vmem:[%s415 + $0x24] sm:$0xf]
    %v426 = vld [vmem:[%s415 + $0x28] sm:$0xf]
    %v427 = vld [vmem:[%s415 + $0x2c] sm:$0xf]
    %v428 = vld [vmem:[%s415 + $0x30] sm:$0xf]
    %v429 = vld [vmem:[%s415 + $0x34] sm:$0xf]
    %v430 = vld [vmem:[%s415 + $0x38] sm:$0xf]
    %v431 = vld [vmem:[%s415 + $0x3c] sm:$0xf]
    %v432 = vld [vmem:[#allocation7] sm:$0xf]
    %v433 = vld [vmem:[#allocation7 + $0x4] sm:$0xf]
    %v434 = vld [vmem:[#allocation7 + $0x8] sm:$0xf]
    %v435 = vld [vmem:[#allocation7 + $0xc] sm:$0xf]
    %v436 = vld [vmem:[#allocation7 + $0x10] sm:$0xf]
    %v437 = vld [vmem:[#allocation7 + $0x14] sm:$0xf]
    %v438 = vld [vmem:[#allocation7 + $0x18] sm:$0xf]
    %v439 = vld [vmem:[#allocation7 + $0x1c] sm:$0xf]
    %v440 = vld [vmem:[#allocation7 + $0x20] sm:$0xf]
    %v441 = vld [vmem:[#allocation7 + $0x24] sm:$0xf]
    %v442 = vld [vmem:[#allocation7 + $0x28] sm:$0xf]
    %v443 = vld [vmem:[#allocation7 + $0x2c] sm:$0xf]
    %v444 = vld [vmem:[#allocation7 + $0x30] sm:$0xf]
    %v445 = vld [vmem:[#allocation7 + $0x34] sm:$0xf]
    %v446 = vld [vmem:[#allocation7 + $0x38] sm:$0xf]
    %v447 = vld [vmem:[#allocation7 + $0x3c] sm:$0xf]
    %v464 = vunpack.c.l.b16 %v432
    %v465 = vunpack.c.l.b16 %v433
    %v466 = vunpack.c.l.b16 %v434
    %v467 = vunpack.c.l.b16 %v435
    %v468 = vunpack.c.l.b16 %v436
    %v469 = vunpack.c.l.b16 %v437
    %v470 = vunpack.c.l.b16 %v438
    %v471 = vunpack.c.l.b16 %v439
    %v472 = vunpack.c.l.b16 %v440
    %v473 = vunpack.c.l.b16 %v441
    %v474 = vunpack.c.l.b16 %v442
    %v475 = vunpack.c.l.b16 %v443
    %v476 = vunpack.c.l.b16 %v444
    %v477 = vunpack.c.l.b16 %v445
    %v478 = vunpack.c.l.b16 %v446
    %v479 = vunpack.c.l.b16 %v447
    %v480 = vpack.c.b16 %v465, %v464
    %v481 = vpack.c.b16 %v467, %v466
    %v482 = vpack.c.b16 %v469, %v468
    %v483 = vpack.c.b16 %v471, %v470
    %v484 = vpack.c.b16 %v473, %v472
    %v485 = vpack.c.b16 %v475, %v474
    %v486 = vpack.c.b16 %v477, %v476
    %v487 = vpack.c.b16 %v479, %v478
    %496 = vmatprep.subr.bf16.mxu0 0
    %497 = vmatpush1.bf16.msra.mxu0 %v487
    %498 = vmatprep.subr.bf16.mxu0 0
    %499 = vmatpush1.bf16.msra.mxu0 %v486
    %500 = vmatprep.subr.bf16.mxu0 0
    %501 = vmatpush1.bf16.msra.mxu0 %v485
    %502 = vmatprep.subr.bf16.mxu0 0
    %503 = vmatpush1.bf16.msra.mxu0 %v484
    %504 = vmatprep.subr.bf16.mxu0 0
    %505 = vmatpush1.bf16.msra.mxu0 %v483
    %506 = vmatprep.subr.bf16.mxu0 0
    %507 = vmatpush1.bf16.msra.mxu0 %v482
    %508 = vmatprep.subr.bf16.mxu0 0
    %509 = vmatpush1.bf16.msra.mxu0 %v481
    %510 = vmatprep.subr.bf16.mxu0 0
    %511 = vmatpush1.bf16.msra.mxu0 %v480
    %512 = vmatprep.subr.bf16.mxu0 0
    %513 = vmatpush2.bf16.msra.mxu0 0
    %514 = vmatprep.subr.bf16.mxu0 0
    %515 = vmatpush2.bf16.msra.mxu0 0
    %516 = vmatprep.subr.bf16.mxu0 0
    %517 = vmatpush2.bf16.msra.mxu0 0
    %518 = vmatprep.subr.bf16.mxu0 0
    %519 = vmatpush2.bf16.msra.mxu0 0
    %520 = vmatprep.subr.bf16.mxu0 0
    %521 = vmatpush2.bf16.msra.mxu0 0
    %522 = vmatprep.subr.bf16.mxu0 0
    %523 = vmatpush2.bf16.msra.mxu0 0
    %524 = vmatprep.subr.bf16.mxu0 0
    %525 = vmatpush2.bf16.msra.mxu0 0
    %526 = vmatprep.subr.bf16.mxu0 0
    %527 = vmatpush2.bf16.msra.mxu0 0
    %528 = vmatprep.mubr.bf16.mxu0 0
    %529 = vmatmul.mubr.bf16.gmra.mxu0 %v414
    %v530 = vpop.f32.mrf.mxu0
    %v531 = vadd.f32 0.0, %v530
    %v532 = vpop.f32.mrf.mxu0
    %v533 = vpop.f32.mrf.mxu0
    %v534 = vadd.f32 0.0, %v533
    %v535 = vpop.f32.mrf.mxu0
    %536 = vdwg.mxu0
    %s537 = scalar_lea.vmem [#allocation7], 128
    %v538 = vld [vmem:[%s537] sm:$0xf]
    %v539 = vld [vmem:[%s537 + $0x4] sm:$0xf]
    %v540 = vld [vmem:[%s537 + $0x8] sm:$0xf]
    %v541 = vld [vmem:[%s537 + $0xc] sm:$0xf]
    %v542 = vld [vmem:[%s537 + $0x10] sm:$0xf]
    %v543 = vld [vmem:[%s537 + $0x14] sm:$0xf]
    %v544 = vld [vmem:[%s537 + $0x18] sm:$0xf]
    %v545 = vld [vmem:[%s537 + $0x1c] sm:$0xf]
    %v546 = vld [vmem:[%s537 + $0x20] sm:$0xf]
    %v547 = vld [vmem:[%s537 + $0x24] sm:$0xf]
    %v548 = vld [vmem:[%s537 + $0x28] sm:$0xf]
    %v549 = vld [vmem:[%s537 + $0x2c] sm:$0xf]
    %v550 = vld [vmem:[%s537 + $0x30] sm:$0xf]
    %v551 = vld [vmem:[%s537 + $0x34] sm:$0xf]
    %v552 = vld [vmem:[%s537 + $0x38] sm:$0xf]
    %v553 = vld [vmem:[%s537 + $0x3c] sm:$0xf]
    %v570 = vunpack.c.l.b16 %v538
    %v571 = vunpack.c.l.b16 %v539
    %v572 = vunpack.c.l.b16 %v540
    %v573 = vunpack.c.l.b16 %v541
    %v574 = vunpack.c.l.b16 %v542
    %v575 = vunpack.c.l.b16 %v543
    %v576 = vunpack.c.l.b16 %v544
    %v577 = vunpack.c.l.b16 %v545
    %v578 = vunpack.c.l.b16 %v546
    %v579 = vunpack.c.l.b16 %v547
    %v580 = vunpack.c.l.b16 %v548
    %v581 = vunpack.c.l.b16 %v549
    %v582 = vunpack.c.l.b16 %v550
    %v583 = vunpack.c.l.b16 %v551
    %v584 = vunpack.c.l.b16 %v552
    %v585 = vunpack.c.l.b16 %v553
    %v586 = vpack.c.b16 %v571, %v570
    %v587 = vpack.c.b16 %v573, %v572
    %v588 = vpack.c.b16 %v575, %v574
    %v589 = vpack.c.b16 %v577, %v576
    %v590 = vpack.c.b16 %v579, %v578
    %v591 = vpack.c.b16 %v581, %v580
    %v592 = vpack.c.b16 %v583, %v582
    %v593 = vpack.c.b16 %v585, %v584
    %602 = vmatprep.subr.bf16.mxu0 0
    %603 = vmatpush1.bf16.msra.mxu0 %v593
    %604 = vmatprep.subr.bf16.mxu0 0
    %605 = vmatpush1.bf16.msra.mxu0 %v592
    %606 = vmatprep.subr.bf16.mxu0 0
    %607 = vmatpush1.bf16.msra.mxu0 %v591
    %608 = vmatprep.subr.bf16.mxu0 0
    %609 = vmatpush1.bf16.msra.mxu0 %v590
    %610 = vmatprep.subr.bf16.mxu0 0
    %611 = vmatpush1.bf16.msra.mxu0 %v589
    %612 = vmatprep.subr.bf16.mxu0 0
    %613 = vmatpush1.bf16.msra.mxu0 %v588
    %614 = vmatprep.subr.bf16.mxu0 0
    %615 = vmatpush1.bf16.msra.mxu0 %v587
    %616 = vmatprep.subr.bf16.mxu0 0
    %617 = vmatpush1.bf16.msra.mxu0 %v586
    %618 = vmatprep.subr.bf16.mxu0 0
    %619 = vmatpush2.bf16.msra.mxu0 0
    %620 = vmatprep.subr.bf16.mxu0 0
    %621 = vmatpush2.bf16.msra.mxu0 0
    %622 = vmatprep.subr.bf16.mxu0 0
    %623 = vmatpush2.bf16.msra.mxu0 0
    %624 = vmatprep.subr.bf16.mxu0 0
    %625 = vmatpush2.bf16.msra.mxu0 0
    %626 = vmatprep.subr.bf16.mxu0 0
    %627 = vmatpush2.bf16.msra.mxu0 0
    %628 = vmatprep.subr.bf16.mxu0 0
    %629 = vmatpush2.bf16.msra.mxu0 0
    %630 = vmatprep.subr.bf16.mxu0 0
    %631 = vmatpush2.bf16.msra.mxu0 0
    %632 = vmatprep.subr.bf16.mxu0 0
    %633 = vmatpush2.bf16.msra.mxu0 0
    %634 = vmatprep.mubr.bf16.mxu0 0
    %635 = vmatmul.mubr.bf16.gmra.mxu0 %v414
    %v636 = vpop.f32.mrf.mxu0
    %v637 = vadd.f32 0.0, %v636
    %v638 = vpop.f32.mrf.mxu0
    %v639 = vpop.f32.mrf.mxu0
    %v640 = vadd.f32 0.0, %v639
    %v641 = vpop.f32.mrf.mxu0
    %642 = vdwg.mxu0
    %v643 = vrot.slane %v531, 7
    %v644 = vrot.slane %v534, 7
    %v645 = vsel %vm300, %v643, %v644
    %v646 = vsel %vm300, %v644, %v643
    %v647 = vsel %vm68, %v646, 0.0
    %v648 = vsel %vm68, %v645, 0.0
    %v649 = vrot.slane %v637, 1
    %v650 = vrot.slane %v640, 1
    %v651 = vsel %vm307, %v649, %v650
    %v652 = vsel %vm307, %v650, %v649
    %v653 = vsel %vm69, %v651, 0.0
    %v654 = vsel %vm69, %v652, 0.0
    %v671 = vunpack.c.l.b16 %v416
    %v672 = vunpack.c.l.b16 %v417
    %v673 = vunpack.c.l.b16 %v418
    %v674 = vunpack.c.l.b16 %v419
    %v675 = vunpack.c.l.b16 %v420
    %v676 = vunpack.c.l.b16 %v421
    %v677 = vunpack.c.l.b16 %v422
    %v678 = vunpack.c.l.b16 %v423
    %v679 = vunpack.c.l.b16 %v424
    %v680 = vunpack.c.l.b16 %v425
    %v681 = vunpack.c.l.b16 %v426
    %v682 = vunpack.c.l.b16 %v427
    %v683 = vunpack.c.l.b16 %v428
    %v684 = vunpack.c.l.b16 %v429
    %v685 = vunpack.c.l.b16 %v430
    %v686 = vunpack.c.l.b16 %v431
    %v687 = vpack.c.b16 %v672, %v671
    %v688 = vpack.c.b16 %v674, %v673
    %v689 = vpack.c.b16 %v676, %v675
    %v690 = vpack.c.b16 %v678, %v677
    %v691 = vpack.c.b16 %v680, %v679
    %v692 = vpack.c.b16 %v682, %v681
    %v693 = vpack.c.b16 %v684, %v683
    %v694 = vpack.c.b16 %v686, %v685
    %703 = vmatprep.subr.bf16.mxu0 0
    %704 = vmatpush1.bf16.msra.mxu0 %v694
    %705 = vmatprep.subr.bf16.mxu0 0
    %706 = vmatpush1.bf16.msra.mxu0 %v693
    %707 = vmatprep.subr.bf16.mxu0 0
    %708 = vmatpush1.bf16.msra.mxu0 %v692
    %709 = vmatprep.subr.bf16.mxu0 0
    %710 = vmatpush1.bf16.msra.mxu0 %v691
    %711 = vmatprep.subr.bf16.mxu0 0
    %712 = vmatpush1.bf16.msra.mxu0 %v690
    %713 = vmatprep.subr.bf16.mxu0 0
    %714 = vmatpush1.bf16.msra.mxu0 %v689
    %715 = vmatprep.subr.bf16.mxu0 0
    %716 = vmatpush1.bf16.msra.mxu0 %v688
    %717 = vmatprep.subr.bf16.mxu0 0
    %718 = vmatpush1.bf16.msra.mxu0 %v687
    %719 = vmatprep.subr.bf16.mxu0 0
    %720 = vmatpush2.bf16.msra.mxu0 0
    %721 = vmatprep.subr.bf16.mxu0 0
    %722 = vmatpush2.bf16.msra.mxu0 0
    %723 = vmatprep.subr.bf16.mxu0 0
    %724 = vmatpush2.bf16.msra.mxu0 0
    %725 = vmatprep.subr.bf16.mxu0 0
    %726 = vmatpush2.bf16.msra.mxu0 0
    %727 = vmatprep.subr.bf16.mxu0 0
    %728 = vmatpush2.bf16.msra.mxu0 0
    %729 = vmatprep.subr.bf16.mxu0 0
    %730 = vmatpush2.bf16.msra.mxu0 0
    %731 = vmatprep.subr.bf16.mxu0 0
    %732 = vmatpush2.bf16.msra.mxu0 0
    %733 = vmatprep.subr.bf16.mxu0 0
    %734 = vmatpush2.bf16.msra.mxu0 0
    %735 = vmatprep.mubr.bf16.mxu0 0
    %736 = vmatmul.mubr.bf16.gmra.mxu0 %v414
    %v737 = vpop.f32.mrf.mxu0
    %v738 = vadd.f32 %v647, %v737
    %v739 = vpop.f32.mrf.mxu0
    %v740 = vpop.f32.mrf.mxu0
    %v741 = vadd.f32 %v648, %v740
    %v742 = vpop.f32.mrf.mxu0
    %743 = vdwg.mxu0
    %v744 = vadd.f32 %v738, %v653
    %v745 = vadd.f32 %v741, %v654
    %v746 = vld [vmem:[%s4] sm:$0x1]
    %v748 = vlaneseq
    %v749 = vshrl.u32 %v748, 7
    %v750 = vsub.s32 0, %v749
    %v751 = vrot.slane %v746, %v750
    %v753 = vadd.f32 %v744, %v751
    %v754 = vadd.f32 %v745, %v751
    %v755 = vmax.f32 %v753, 0.0
    %v756 = vmax.f32 %v754, 0.0
    %v757 = vadd.f32 %v63, %v755
    %v758 = vadd.f32 %v64, %v756
    %v759 = vmax.f32 %v757, 0.0
    %v760 = vmax.f32 %v758, 0.0
    %761 = vst [vmem:[#allocation8] sm:$0xff] %v759
    %762 = vst [vmem:[#allocation8 + $0x8] sm:$0xff] %v760
    // Predicated region
    $region34: #{tpu_custom_call.1} parent=1 // pred_check
      _
    $region35: #{tpu_custom_call.1} parent=1 // pred_check_branch
      %764 = sbr.rel (0) target = $region37
    $region36: #{tpu_custom_call.1} parent=1 // pred_region
      %s766 = ssub.s32 256, 256
      %767 = vsyncadd [#allocation4], %s766
      %s768 = sshll.u32 [#allocation8], 4
      %s769 = int_to_ptr.vmem [resolvable:$true] %s768
      %774 = dma.vmem_to_hbm [thread:$0]  %s769, 256, %s5, [#allocation4], 128, 128, 8
    $region37: #{tpu_custom_call.1} parent=1 // pred_fallthru
      _
    // Predicated region
    $region38: #{tpu_custom_call.1} parent=1 // pred_check
      _
    $region39: #{tpu_custom_call.1} parent=1 // pred_check_branch
      %776 = sbr.rel (0) target = $region41
    $region40: #{tpu_custom_call.1} parent=1 // pred_region
      %777 = dma.done [#allocation4], 256
    $region41: #{tpu_custom_call.1} parent=1 // pred_fallthru
      _
    %778 = vsyncpa [#allocation3], 1
    %779 = vsyncpa [#allocation6], 1
    %780 = vsyncpa [#allocation4], 1

</llo_original>
